<compile_context>
chip_gen: v5e
topology: v5e:2x2
jax: 0.10.0
libtpu: 0.0.40
codegen_flags: <defaults>
</compile_context>

<pallas_src>
import functools

import jax
import jax.numpy as jnp
import numpy as np
from jax import lax
from jax.experimental import pallas as pl
from jax.experimental.pallas import tpu as pltpu


def _embedding_kernel(p_ref, w_ref, gmask_ref, rev_ref, c_ref, y1_ref, y2_ref,
                      *, B, L, G, O):
    """p_ref:     (B*L*G, Kp) bf16 im2col rows (row r -> (b,l) = r // G, group = r % G)
       w_ref:     (Kp, O)     bf16 dense conv weight (column o -> group o // (O/G))
       gmask_ref: (G, O)      f32 0/1 group-selection mask
       rev_ref:   (M, M)      f32 0/1 per-batch sequence-reversal permutation (M = B*L)
       c_ref:     (3, O)      f32 [conv bias ; embedding_1 ; embedding_2]
       y1_ref, y2_ref: (B, L+1, O) outputs."""
    M = B * L

    # Single MXU GEMM over the (padded) patch axis; bf16 operands, f32 accumulation.
    full = jnp.dot(p_ref[...], w_ref[...],
                   preferred_element_type=jnp.float32)               # (M*G, O) f32

    # Grouped-conv recovery: (G, O) mask broadcast over M, then sublane-reduce over G
    # (exactly one contributing group per output column).
    masked = full.reshape(M, G, O) * gmask_ref[...].reshape(1, G, O)
    conv = jnp.sum(masked, axis=1) + c_ref[0:1, :]                   # (M, O) + conv bias

    # torch.flip over the sequence axis == exact per-batch row permutation (MXU, tiny).
    conv_rev = jnp.dot(rev_ref[...], conv,
                       preferred_element_type=jnp.float32)           # (M, O)

    e1 = jnp.broadcast_to(c_ref[1:2, :].reshape(1, 1, O), (B, 1, O))
    e2 = jnp.broadcast_to(c_ref[2:3, :].reshape(1, 1, O), (B, 1, O))
    y1_ref[:, 0:1, :] = e1.astype(y1_ref.dtype)
    y2_ref[:, 0:1, :] = e2.astype(y2_ref.dtype)

    # One (L, O) slab store per batch per output (static unroll over tiny B).
    for b in range(B):
        blk = conv[b * L:(b + 1) * L, :]
        blk_r = conv_rev[b * L:(b + 1) * L, :]
        y1_ref[b:b + 1, 1:, :] = blk.reshape(1, L, O).astype(y1_ref.dtype)
        y2_ref[b:b + 1, 1:, :] = blk_r.reshape(1, L, O).astype(y2_ref.dtype)


def embedding_forward(x, conv_w, conv_b, emb1, emb2, *, patch):
    """x: (B, C_in, H, W) float32 (torch NCHW). Returns (y1, y2), each (B, L+1, C_out)."""
    ph, pw = patch
    B, C_in, H, W = x.shape
    G = H                        # groups == spectral_dimension (channels after 'b c h w -> b h c w')
    assert W == pw and C_in % ph == 0
    L = C_in // ph               # seq_len
    O = conv_w.shape[0]          # spectral_dimension_expand
    assert O % G == 0
    O4 = O // G
    K = ph * pw
    Kp = ((K + 127) // 128) * 128   # lane-aligned (zero-padded) contraction dim
    M = B * L
    Lp1 = L + 1

    # ---- glue: im2col with batch, seq and group folded into the GEMM M axis ----
    # TODO(synk): at production sizes, fold this im2col into the kernel via a BlockSpec
    # index_map over x instead of materializing the patch matrix in HBM.
    xp = jnp.transpose(x, (0, 2, 1, 3))                              # 'b c h w -> b h c w'
    patches = xp.reshape(B, G, L, ph, pw)                            # split strided spatial axis
    patches = jnp.transpose(patches, (0, 2, 1, 3, 4)).reshape(M * G, K)
    p = jnp.pad(patches, ((0, 0), (0, Kp - K))).astype(jnp.bfloat16)  # (M*G, Kp) bf16

    # Dense weight (no block-diagonal inflation): w2[k, o] = conv_w[o, 0, kh, kw]
    w2 = jnp.transpose(conv_w.reshape(O, K))                          # (K, O)
    w2 = jnp.pad(w2, ((0, Kp - K), (0, 0))).astype(jnp.bfloat16)      # (Kp, O) bf16

    # Small f32 constants: row 0 = conv bias, row 1 = embedding_1, row 2 = embedding_2
    consts = jnp.concatenate([conv_b.reshape(1, O),
                              emb1.reshape(1, O),
                              emb2.reshape(1, O)], axis=0).astype(jnp.float32)

    # Host-precomputed (static) group-selection mask and per-batch row-reversal matrix.
    gmask = jnp.asarray(
        (np.arange(G)[:, None] == (np.arange(O)[None, :] // O4)).astype(np.float32))
    rev_np = np.zeros((M, M), np.float32)
    for b in range(B):
        for l in range(L):
            rev_np[b * L + l, b * L + (L - 1 - l)] = 1.0
    rev = jnp.asarray(rev_np)

    # TODO(synk): for large B*L (esp. on v7x: 2 TCs, 64 MiB VMEM), add a "parallel" grid
    # axis over M-tiles instead of keeping everything resident in one step.
    vmem = pl.BlockSpec(memory_space=pltpu.MemorySpace.VMEM)          # whole array, no blocking
    y1, y2 = pl.pallas_call(
        functools.partial(_embedding_kernel, B=B, L=L, G=G, O=O),
        out_shape=(jax.ShapeDtypeStruct((B, Lp1, O), x.dtype),
                   jax.ShapeDtypeStruct((B, Lp1, O), x.dtype)),
        in_specs=[vmem, vmem, vmem, vmem, vmem],
        out_specs=(vmem, vmem),
    )(p, w2, gmask, rev, consts)
    return y1, y2


def reference_forward(x, conv_w, conv_b, emb1, emb2, *, patch):
    """Pure-JAX mirror of the torch forward (for correctness checking)."""
    B = x.shape[0]
    xp = jnp.transpose(x, (0, 2, 1, 3))                               # 'b c h w -> b h c w'
    y = lax.conv_general_dilated(
        xp, conv_w, window_strides=patch, padding='VALID',
        dimension_numbers=('NCHW', 'OIHW', 'NCHW'),
        feature_group_count=xp.shape[1])
    y = y + conv_b.reshape(1, -1, 1, 1)
    y = y.reshape(B, y.shape[1], -1)                                  # flatten(2) -> (b, c, l)
    e1 = jnp.broadcast_to(emb1, (B,) + emb1.shape[1:])
    e2 = jnp.broadcast_to(emb2, (B,) + emb2.shape[1:])
    y1 = jnp.concatenate([e1, y], axis=2)
    y2 = jnp.flip(jnp.concatenate([y, e2], axis=2), axis=2)
    return jnp.transpose(y1, (0, 2, 1)), jnp.transpose(y2, (0, 2, 1))


if __name__ == "__main__":
    # Small config consistent with ModelArgs: image_size=(C, H, W)=(12, 32, 32)
    #   spectral_dimension = H = 32, spectral_patch_size = (3, 32)
    #   hidden_dimension = 4 -> spectral_dimension_expand = 128, seq_len = 12 // 3 = 4
    B, C_in, H, W = 2, 12, 32, 32
    ph, pw = 3, 32
    G = H
    O = 4 * G            # spectral_dimension_expand
    L = C_in // ph

    key = jax.random.PRNGKey(0)
    kx, kw, kb, ke1, ke2 = jax.random.split(key, 5)
    x = jax.random.normal(kx, (B, C_in, H, W), dtype=jnp.float32)
    # Conv2d(in=G, out=O, kernel=(ph, pw), groups=G) -> weight (O, 1, ph, pw), bias (O,)
    conv_w = jax.random.uniform(kw, (O, 1, ph, pw), minval=-0.1, maxval=0.1,
                                dtype=jnp.float32)
    conv_b = jax.random.uniform(kb, (O,), minval=-0.1, maxval=0.1, dtype=jnp.float32)
    # Module inits embeddings to zeros; use small random values so the path is exercised.
    emb1 = 0.02 * jax.random.normal(ke1, (1, O, 1), dtype=jnp.float32)
    emb2 = 0.02 * jax.random.normal(ke2, (1, O, 1), dtype=jnp.float32)

    fwd = jax.jit(functools.partial(embedding_forward, patch=(ph, pw)))
    y1, y2 = fwd(x, conv_w, conv_b, emb1, emb2)
    jax.block_until_ready((y1, y2))

    r1, r2 = reference_forward(x, conv_w, conv_b, emb1, emb2, patch=(ph, pw))
    assert y1.shape == (B, L + 1, O) and y2.shape == (B, L + 1, O)
    # bf16 GEMM operands (f32 accumulation) -> bf16-appropriate tolerance.
    assert np.allclose(np.asarray(y1), np.asarray(r1), rtol=2e-2, atol=2e-2)
    assert np.allclose(np.asarray(y2), np.asarray(r2), rtol=2e-2, atol=2e-2)

    print("KERNEL_OK")
</pallas_src>

<mosaic_0001>
module attributes {stable_mosaic.version = 11 : i64} {
  func.func @_embedding_kernel(%arg0: memref<256x128xbf16, #tpu.memory_space<vmem>>, %arg1: memref<128x128xbf16, #tpu.memory_space<vmem>>, %arg2: memref<32x128xf32, #tpu.memory_space<vmem>>, %arg3: memref<8x8xf32, #tpu.memory_space<vmem>>, %arg4: memref<3x128xf32, #tpu.memory_space<vmem>>, %arg5: memref<2x5x128xf32, #tpu.memory_space<vmem>>, %arg6: memref<2x5x128xf32, #tpu.memory_space<vmem>>) attributes {dimension_semantics = [], scalar_prefetch = 0 : i64, scratch_operands = 0 : i64, tpu.core_type = #tpu.core_type<tc>} {
    %c0 = arith.constant 0 : index
    %c0_0 = arith.constant 0 : index
    %0 = vector.load %arg0[%c0, %c0_0] : memref<256x128xbf16, #tpu.memory_space<vmem>>, vector<256x128xbf16>
    %c0_1 = arith.constant 0 : index
    %c0_2 = arith.constant 0 : index
    %1 = vector.load %arg1[%c0_1, %c0_2] : memref<128x128xbf16, #tpu.memory_space<vmem>>, vector<128x128xbf16>
    %cst = arith.constant dense<0.000000e+00> : vector<256x128xf32>
    %2 = tpu.matmul %0, %1, %cst {dimension_numbers = #tpu.dot_dimension_numbers<[1], [0], [0], [1], [0, 0, 1, 1], [], []>} : vector<256x128xbf16>, vector<128x128xbf16>, vector<256x128xf32> -> vector<256x128xf32>
    %3 = vector.shape_cast %2 : vector<256x128xf32> to vector<8x32x128xf32>
    %c0_3 = arith.constant 0 : index
    %c0_4 = arith.constant 0 : index
    %4 = vector.load %arg2[%c0_3, %c0_4] : memref<32x128xf32, #tpu.memory_space<vmem>>, vector<32x128xf32>
    %5 = vector.shape_cast %4 : vector<32x128xf32> to vector<1x32x128xf32>
    %6 = vector.broadcast %5 : vector<1x32x128xf32> to vector<8x32x128xf32>
    %7 = arith.mulf %3, %6 : vector<8x32x128xf32>
    %cst_5 = arith.constant dense<0.000000e+00> : vector<8x128xf32>
    %8 = vector.multi_reduction <add>, %7, %cst_5 [1] : vector<8x32x128xf32> to vector<8x128xf32>
    %c0_6 = arith.constant 0 : index
    %c0_7 = arith.constant 0 : index
    %9 = vector.load %arg4[%c0_6, %c0_7] : memref<3x128xf32, #tpu.memory_space<vmem>>, vector<1x128xf32>
    %10 = vector.broadcast %9 : vector<1x128xf32> to vector<8x128xf32>
    %11 = arith.addf %8, %10 : vector<8x128xf32>
    %c0_8 = arith.constant 0 : index
    %c0_9 = arith.constant 0 : index
    %12 = vector.load %arg3[%c0_8, %c0_9] : memref<8x8xf32, #tpu.memory_space<vmem>>, vector<8x8xf32>
    %cst_10 = arith.constant dense<0.000000e+00> : vector<8x128xf32>
    %13 = tpu.matmul %12, %11, %cst_10 {dimension_numbers = #tpu.dot_dimension_numbers<[1], [0], [0], [1], [0, 0, 1, 1], [], []>} : vector<8x8xf32>, vector<8x128xf32>, vector<8x128xf32> -> vector<8x128xf32>
    %c1 = arith.constant 1 : index
    %c0_11 = arith.constant 0 : index
    %14 = vector.load %arg4[%c1, %c0_11] : memref<3x128xf32, #tpu.memory_space<vmem>>, vector<1x128xf32>
    %15 = vector.shape_cast %14 : vector<1x128xf32> to vector<1x1x128xf32>
    %16 = vector.shape_cast %15 : vector<1x1x128xf32> to vector<1x1x128xf32>
    %17 = vector.broadcast %16 : vector<1x1x128xf32> to vector<2x1x128xf32>
    %c2 = arith.constant 2 : index
    %c0_12 = arith.constant 0 : index
    %18 = vector.load %arg4[%c2, %c0_12] : memref<3x128xf32, #tpu.memory_space<vmem>>, vector<1x128xf32>
    %19 = vector.shape_cast %18 : vector<1x128xf32> to vector<1x1x128xf32>
    %20 = vector.shape_cast %19 : vector<1x1x128xf32> to vector<1x1x128xf32>
    %21 = vector.broadcast %20 : vector<1x1x128xf32> to vector<2x1x128xf32>
    %c0_13 = arith.constant 0 : index
    %c0_14 = arith.constant 0 : index
    %c0_15 = arith.constant 0 : index
    %22 = vector.load %arg5[%c0_13, %c0_14, %c0_15] : memref<2x5x128xf32, #tpu.memory_space<vmem>>, vector<2x1x128xf32>
    tpu.vector_store %arg5[%c0_13, %c0_14, %c0_15], %17 {strides = array<i32>} : memref<2x5x128xf32, #tpu.memory_space<vmem>>, vector<2x1x128xf32>,
    %c0_16 = arith.constant 0 : index
    %c0_17 = arith.constant 0 : index
    %c0_18 = arith.constant 0 : index
    %23 = vector.load %arg6[%c0_16, %c0_17, %c0_18] : memref<2x5x128xf32, #tpu.memory_space<vmem>>, vector<2x1x128xf32>
    tpu.vector_store %arg6[%c0_16, %c0_17, %c0_18], %21 {strides = array<i32>} : memref<2x5x128xf32, #tpu.memory_space<vmem>>, vector<2x1x128xf32>,
    %24 = vector.extract_strided_slice %11 {offsets = [0, 0], sizes = [4, 128], strides = [1, 1]} : vector<8x128xf32> to vector<4x128xf32>
    %25 = vector.extract_strided_slice %13 {offsets = [0, 0], sizes = [4, 128], strides = [1, 1]} : vector<8x128xf32> to vector<4x128xf32>
    %26 = vector.shape_cast %24 : vector<4x128xf32> to vector<1x4x128xf32>
    %c0_19 = arith.constant 0 : index
    %c1_20 = arith.constant 1 : index
    %c0_21 = arith.constant 0 : index
    %27 = vector.load %arg5[%c0_19, %c1_20, %c0_21] : memref<2x5x128xf32, #tpu.memory_space<vmem>>, vector<1x4x128xf32>
    tpu.vector_store %arg5[%c0_19, %c1_20, %c0_21], %26 {strides = array<i32>} : memref<2x5x128xf32, #tpu.memory_space<vmem>>, vector<1x4x128xf32>,
    %28 = vector.shape_cast %25 : vector<4x128xf32> to vector<1x4x128xf32>
    %c0_22 = arith.constant 0 : index
    %c1_23 = arith.constant 1 : index
    %c0_24 = arith.constant 0 : index
    %29 = vector.load %arg6[%c0_22, %c1_23, %c0_24] : memref<2x5x128xf32, #tpu.memory_space<vmem>>, vector<1x4x128xf32>
    tpu.vector_store %arg6[%c0_22, %c1_23, %c0_24], %28 {strides = array<i32>} : memref<2x5x128xf32, #tpu.memory_space<vmem>>, vector<1x4x128xf32>,
    %30 = vector.extract_strided_slice %11 {offsets = [4, 0], sizes = [4, 128], strides = [1, 1]} : vector<8x128xf32> to vector<4x128xf32>
    %31 = vector.extract_strided_slice %13 {offsets = [4, 0], sizes = [4, 128], strides = [1, 1]} : vector<8x128xf32> to vector<4x128xf32>
    %32 = vector.shape_cast %30 : vector<4x128xf32> to vector<1x4x128xf32>
    %c1_25 = arith.constant 1 : index
    %c1_26 = arith.constant 1 : index
    %c0_27 = arith.constant 0 : index
    %33 = vector.load %arg5[%c1_25, %c1_26, %c0_27] : memref<2x5x128xf32, #tpu.memory_space<vmem>>, vector<1x4x128xf32>
    tpu.vector_store %arg5[%c1_25, %c1_26, %c0_27], %32 {strides = array<i32>} : memref<2x5x128xf32, #tpu.memory_space<vmem>>, vector<1x4x128xf32>,
    %34 = vector.shape_cast %31 : vector<4x128xf32> to vector<1x4x128xf32>
    %c1_28 = arith.constant 1 : index
    %c1_29 = arith.constant 1 : index
    %c0_30 = arith.constant 0 : index
    %35 = vector.load %arg6[%c1_28, %c1_29, %c0_30] : memref<2x5x128xf32, #tpu.memory_space<vmem>>, vector<1x4x128xf32>
    tpu.vector_store %arg6[%c1_28, %c1_29, %c0_30], %34 {strides = array<i32>} : memref<2x5x128xf32, #tpu.memory_space<vmem>>, vector<1x4x128xf32>,
    return
  }
}

</mosaic_0001>

<llo_original>
// kernel: embedding_forward.1
$region0: #{embedding_forward.1}
  #allocation0 [shape = 'u32[]', space=smem, size = 0x4, offset = 0x4, fixed_abs, tag = 'smem constant byte address 0x4 - core index']
  #allocation1 [shape = 'u32[72,128]{1,0:T(1,128)}', space=vmem, size = 0x9000, scoped, tag = 'internal scratch']
  %s0 = inlined_call_operand.vmem [shape: bf16[256,128], index: 0, kind: input, shape index: {}]
  %s1 = inlined_call_operand.vmem [shape: bf16[128,128], index: 1, kind: input, shape index: {}]
  %s2 = inlined_call_operand.vmem [shape: f32[32,128], index: 2, kind: input, shape index: {}]
  %s3 = inlined_call_operand.vmem [shape: f32[8,8], index: 3, kind: input, shape index: {}]
  %s4 = inlined_call_operand.vmem [shape: f32[3,128], index: 4, kind: input, shape index: {}]
  %s5 = inlined_call_operand.vmem [shape: f32[2,5,128], index: 5, kind: output, shape index: {0}]
  %s6 = inlined_call_operand.vmem [shape: f32[2,5,128], index: 6, kind: output, shape index: {1}]
  %7 = xla_tuple %s5, %s6
  %s8 = sld [smem:[#allocation0]]
  $region38: #{embedding_forward.1} parent=0
    _
  %s10 = ssub.s32 1, %s8
  %s11 = scalar_select 0, %s10, %s8
  // Predicated region
  $region2: #{embedding_forward.1} parent=0 // pred_check
    _
  $region3: #{embedding_forward.1} parent=0 // pred_check_branch
    %13 = sbr.rel (0) target = $region5
  $region4: #{embedding_forward.1} parent=0 // pred_region
    _
  $region5: #{embedding_forward.1} parent=0 // pred_fallthru
    _
  // Predicated region
  $region6: #{embedding_forward.1} parent=0 // pred_check
    _
  $region7: #{embedding_forward.1} parent=0 // pred_check_branch
    %15 = sbr.rel (0) target = $region9
  $region8: #{embedding_forward.1} parent=0 // pred_region
    _
  $region9: #{embedding_forward.1} parent=0 // pred_fallthru
    _
  // Predicated region
  $region10: #{embedding_forward.1} parent=0 // pred_check
    _
  $region11: #{embedding_forward.1} parent=0 // pred_check_branch
    %17 = sbr.rel (0) target = $region13
  $region12: #{embedding_forward.1} parent=0 // pred_region
    _
  $region13: #{embedding_forward.1} parent=0 // pred_fallthru
    _
  // Predicated region
  $region14: #{embedding_forward.1} parent=0 // pred_check
    _
  $region15: #{embedding_forward.1} parent=0 // pred_check_branch
    %19 = sbr.rel (0) target = $region17
  $region16: #{embedding_forward.1} parent=0 // pred_region
    _
  $region17: #{embedding_forward.1} parent=0 // pred_fallthru
    _
  // Predicated region
  $region18: #{embedding_forward.1} parent=0 // pred_check
    _
  $region19: #{embedding_forward.1} parent=0 // pred_check_branch
    %21 = sbr.rel (0) target = $region21
  $region20: #{embedding_forward.1} parent=0 // pred_region
    _
  $region21: #{embedding_forward.1} parent=0 // pred_fallthru
    _
  %v22 = vld [vmem:[%s0] sm:$0xf]
  %v23 = vld [vmem:[%s0 + $0x4] sm:$0xf]
  %v24 = vld [vmem:[%s0 + $0x8] sm:$0xf]
  %v25 = vld [vmem:[%s0 + $0xc] sm:$0xf]
  %v26 = vld [vmem:[%s0 + $0x10] sm:$0xf]
  %v27 = vld [vmem:[%s0 + $0x14] sm:$0xf]
  %v28 = vld [vmem:[%s0 + $0x18] sm:$0xf]
  %v29 = vld [vmem:[%s0 + $0x1c] sm:$0xf]
  %v30 = vld [vmem:[%s0 + $0x20] sm:$0xf]
  %v31 = vld [vmem:[%s0 + $0x24] sm:$0xf]
  %v32 = vld [vmem:[%s0 + $0x28] sm:$0xf]
  %v33 = vld [vmem:[%s0 + $0x2c] sm:$0xf]
  %v34 = vld [vmem:[%s0 + $0x30] sm:$0xf]
  %v35 = vld [vmem:[%s0 + $0x34] sm:$0xf]
  %v36 = vld [vmem:[%s0 + $0x38] sm:$0xf]
  %v37 = vld [vmem:[%s0 + $0x3c] sm:$0xf]
  %v38 = vld [vmem:[%s0 + $0x40] sm:$0xf]
  %v39 = vld [vmem:[%s0 + $0x44] sm:$0xf]
  %v40 = vld [vmem:[%s0 + $0x48] sm:$0xf]
  %v41 = vld [vmem:[%s0 + $0x4c] sm:$0xf]
  %v42 = vld [vmem:[%s0 + $0x50] sm:$0xf]
  %v43 = vld [vmem:[%s0 + $0x54] sm:$0xf]
  %v44 = vld [vmem:[%s0 + $0x58] sm:$0xf]
  %v45 = vld [vmem:[%s0 + $0x5c] sm:$0xf]
  %v46 = vld [vmem:[%s0 + $0x60] sm:$0xf]
  %v47 = vld [vmem:[%s0 + $0x64] sm:$0xf]
  %v48 = vld [vmem:[%s0 + $0x68] sm:$0xf]
  %v49 = vld [vmem:[%s0 + $0x6c] sm:$0xf]
  %v50 = vld [vmem:[%s0 + $0x70] sm:$0xf]
  %v51 = vld [vmem:[%s0 + $0x74] sm:$0xf]
  %v52 = vld [vmem:[%s0 + $0x78] sm:$0xf]
  %v53 = vld [vmem:[%s0 + $0x7c] sm:$0xf]
  %v54 = vld [vmem:[%s1] sm:$0xf]
  %v55 = vld [vmem:[%s1 + $0x4] sm:$0xf]
  %v56 = vld [vmem:[%s1 + $0x8] sm:$0xf]
  %v57 = vld [vmem:[%s1 + $0xc] sm:$0xf]
  %v58 = vld [vmem:[%s1 + $0x10] sm:$0xf]
  %v59 = vld [vmem:[%s1 + $0x14] sm:$0xf]
  %v60 = vld [vmem:[%s1 + $0x18] sm:$0xf]
  %v61 = vld [vmem:[%s1 + $0x1c] sm:$0xf]
  %v62 = vld [vmem:[%s1 + $0x20] sm:$0xf]
  %v63 = vld [vmem:[%s1 + $0x24] sm:$0xf]
  %v64 = vld [vmem:[%s1 + $0x28] sm:$0xf]
  %v65 = vld [vmem:[%s1 + $0x2c] sm:$0xf]
  %v66 = vld [vmem:[%s1 + $0x30] sm:$0xf]
  %v67 = vld [vmem:[%s1 + $0x34] sm:$0xf]
  %v68 = vld [vmem:[%s1 + $0x38] sm:$0xf]
  %v69 = vld [vmem:[%s1 + $0x3c] sm:$0xf]
  %v102 = vunpack.c.l.b16 %v22
  %v103 = vunpack.c.l.b16 %v23
  %v104 = vunpack.c.l.b16 %v24
  %v105 = vunpack.c.l.b16 %v25
  %v106 = vunpack.c.l.b16 %v26
  %v107 = vunpack.c.l.b16 %v27
  %v108 = vunpack.c.l.b16 %v28
  %v109 = vunpack.c.l.b16 %v29
  %v110 = vunpack.c.l.b16 %v30
  %v111 = vunpack.c.l.b16 %v31
  %v112 = vunpack.c.l.b16 %v32
  %v113 = vunpack.c.l.b16 %v33
  %v114 = vunpack.c.l.b16 %v34
  %v115 = vunpack.c.l.b16 %v35
  %v116 = vunpack.c.l.b16 %v36
  %v117 = vunpack.c.l.b16 %v37
  %v118 = vunpack.c.l.b16 %v38
  %v119 = vunpack.c.l.b16 %v39
  %v120 = vunpack.c.l.b16 %v40
  %v121 = vunpack.c.l.b16 %v41
  %v122 = vunpack.c.l.b16 %v42
  %v123 = vunpack.c.l.b16 %v43
  %v124 = vunpack.c.l.b16 %v44
  %v125 = vunpack.c.l.b16 %v45
  %v126 = vunpack.c.l.b16 %v46
  %v127 = vunpack.c.l.b16 %v47
  %v128 = vunpack.c.l.b16 %v48
  %v129 = vunpack.c.l.b16 %v49
  %v130 = vunpack.c.l.b16 %v50
  %v131 = vunpack.c.l.b16 %v51
  %v132 = vunpack.c.l.b16 %v52
  %v133 = vunpack.c.l.b16 %v53
  %v134 = vpack.c.b16 %v103, %v102
  %v135 = vpack.c.b16 %v105, %v104
  %v136 = vpack.c.b16 %v107, %v106
  %v137 = vpack.c.b16 %v109, %v108
  %v138 = vpack.c.b16 %v111, %v110
  %v139 = vpack.c.b16 %v113, %v112
  %v140 = vpack.c.b16 %v115, %v114
  %v141 = vpack.c.b16 %v117, %v116
  %v142 = vpack.c.b16 %v119, %v118
  %v143 = vpack.c.b16 %v121, %v120
  %v144 = vpack.c.b16 %v123, %v122
  %v145 = vpack.c.b16 %v125, %v124
  %v146 = vpack.c.b16 %v127, %v126
  %v147 = vpack.c.b16 %v129, %v128
  %v148 = vpack.c.b16 %v131, %v130
  %v149 = vpack.c.b16 %v133, %v132
  %v182 = vunpack.c.l.b16 %v54
  %v183 = vunpack.c.l.b16 %v55
  %v184 = vunpack.c.l.b16 %v56
  %v185 = vunpack.c.l.b16 %v57
  %v186 = vunpack.c.l.b16 %v58
  %v187 = vunpack.c.l.b16 %v59
  %v188 = vunpack.c.l.b16 %v60
  %v189 = vunpack.c.l.b16 %v61
  %v190 = vunpack.c.l.b16 %v62
  %v191 = vunpack.c.l.b16 %v63
  %v192 = vunpack.c.l.b16 %v64
  %v193 = vunpack.c.l.b16 %v65
  %v194 = vunpack.c.l.b16 %v66
  %v195 = vunpack.c.l.b16 %v67
  %v196 = vunpack.c.l.b16 %v68
  %v197 = vunpack.c.l.b16 %v69
  %v198 = vpack.c.b16 %v183, %v182
  %v199 = vpack.c.b16 %v185, %v184
  %v200 = vpack.c.b16 %v187, %v186
  %v201 = vpack.c.b16 %v189, %v188
  %v202 = vpack.c.b16 %v191, %v190
  %v203 = vpack.c.b16 %v193, %v192
  %v204 = vpack.c.b16 %v195, %v194
  %v205 = vpack.c.b16 %v197, %v196
  %214 = vmatpush.bf16.msra.mxu0 %v205
  %215 = vmatpush.bf16.msra.mxu0 %v204
  %216 = vmatpush.bf16.msra.mxu0 %v203
  %217 = vmatpush.bf16.msra.mxu0 %v202
  %218 = vmatpush.bf16.msra.mxu0 %v201
  %219 = vmatpush.bf16.msra.mxu0 %v200
  %220 = vmatpush.bf16.msra.mxu0 %v199
  %221 = vmatpush.bf16.msra.mxu0 %v198
  %222 = vmatmul.bf16.gmra.mxu0 %v134
  %v223 = vpop.f32.mrf.mxu0
  %v224 = vadd.f32 0.0, %v223
  %v225 = vpop.f32.mrf.mxu0
  %v226 = vadd.f32 0.0, %v225
  %227 = vmatmul.bf16.gmra.mxu0 %v135
  %v228 = vpop.f32.mrf.mxu0
  %v229 = vadd.f32 0.0, %v228
  %v230 = vpop.f32.mrf.mxu0
  %v231 = vadd.f32 0.0, %v230
  %232 = vmatmul.bf16.gmra.mxu0 %v136
  %v233 = vpop.f32.mrf.mxu0
  %v234 = vadd.f32 0.0, %v233
  %v235 = vpop.f32.mrf.mxu0
  %v236 = vadd.f32 0.0, %v235
  %237 = vmatmul.bf16.gmra.mxu0 %v137
  %v238 = vpop.f32.mrf.mxu0
  %v239 = vadd.f32 0.0, %v238
  %v240 = vpop.f32.mrf.mxu0
  %v241 = vadd.f32 0.0, %v240
  %242 = vmatmul.bf16.gmra.mxu0 %v138
  %v243 = vpop.f32.mrf.mxu0
  %v244 = vadd.f32 0.0, %v243
  %v245 = vpop.f32.mrf.mxu0
  %v246 = vadd.f32 0.0, %v245
  %247 = vmatmul.bf16.gmra.mxu0 %v139
  %v248 = vpop.f32.mrf.mxu0
  %v249 = vadd.f32 0.0, %v248
  %v250 = vpop.f32.mrf.mxu0
  %v251 = vadd.f32 0.0, %v250
  %252 = vmatmul.bf16.gmra.mxu0 %v140
  %v253 = vpop.f32.mrf.mxu0
  %v254 = vadd.f32 0.0, %v253
  %v255 = vpop.f32.mrf.mxu0
  %v256 = vadd.f32 0.0, %v255
  %257 = vmatmul.bf16.gmra.mxu0 %v141
  %v258 = vpop.f32.mrf.mxu0
  %v259 = vadd.f32 0.0, %v258
  %v260 = vpop.f32.mrf.mxu0
  %v261 = vadd.f32 0.0, %v260
  %262 = vmatmul.bf16.gmra.mxu0 %v142
  %v263 = vpop.f32.mrf.mxu0
  %v264 = vadd.f32 0.0, %v263
  %v265 = vpop.f32.mrf.mxu0
  %v266 = vadd.f32 0.0, %v265
  %267 = vmatmul.bf16.gmra.mxu0 %v143
  %v268 = vpop.f32.mrf.mxu0
  %v269 = vadd.f32 0.0, %v268
  %v270 = vpop.f32.mrf.mxu0
  %v271 = vadd.f32 0.0, %v270
  %272 = vmatmul.bf16.gmra.mxu0 %v144
  %v273 = vpop.f32.mrf.mxu0
  %v274 = vadd.f32 0.0, %v273
  %v275 = vpop.f32.mrf.mxu0
  %v276 = vadd.f32 0.0, %v275
  %277 = vmatmul.bf16.gmra.mxu0 %v145
  %v278 = vpop.f32.mrf.mxu0
  %v279 = vadd.f32 0.0, %v278
  %v280 = vpop.f32.mrf.mxu0
  %v281 = vadd.f32 0.0, %v280
  %282 = vmatmul.bf16.gmra.mxu0 %v146
  %v283 = vpop.f32.mrf.mxu0
  %v284 = vadd.f32 0.0, %v283
  %v285 = vpop.f32.mrf.mxu0
  %v286 = vadd.f32 0.0, %v285
  %287 = vmatmul.bf16.gmra.mxu0 %v147
  %v288 = vpop.f32.mrf.mxu0
  %v289 = vadd.f32 0.0, %v288
  %v290 = vpop.f32.mrf.mxu0
  %v291 = vadd.f32 0.0, %v290
  %292 = vmatmul.bf16.gmra.mxu0 %v148
  %v293 = vpop.f32.mrf.mxu0
  %v294 = vadd.f32 0.0, %v293
  %v295 = vpop.f32.mrf.mxu0
  %v296 = vadd.f32 0.0, %v295
  %297 = vmatmul.bf16.gmra.mxu0 %v149
  %v298 = vpop.f32.mrf.mxu0
  %v299 = vadd.f32 0.0, %v298
  %v300 = vpop.f32.mrf.mxu0
  %v301 = vadd.f32 0.0, %v300
  %302 = vdwg.mxu0
  %v303 = vld [vmem:[%s2] sm:$0xff]
  %v304 = vld [vmem:[%s2 + $0x8] sm:$0xff]
  %v305 = vld [vmem:[%s2 + $0x10] sm:$0xff]
  %v306 = vld [vmem:[%s2 + $0x18] sm:$0xff]
  %v307 = vmul.f32 %v224, %v303
  %v308 = vmul.f32 %v226, %v304
  %v309 = vmul.f32 %v229, %v305
  %v310 = vmul.f32 %v231, %v306
  %v311 = vmul.f32 %v234, %v303
  %v312 = vmul.f32 %v236, %v304
  %v313 = vmul.f32 %v239, %v305
  %v314 = vmul.f32 %v241, %v306
  %v315 = vmul.f32 %v244, %v303
  %v316 = vmul.f32 %v246, %v304
  %v317 = vmul.f32 %v249, %v305
  %v318 = vmul.f32 %v251, %v306
  %v319 = vmul.f32 %v254, %v303
  %v320 = vmul.f32 %v256, %v304
  %v321 = vmul.f32 %v259, %v305
  %v322 = vmul.f32 %v261, %v306
  %v323 = vmul.f32 %v264, %v303
  %v324 = vmul.f32 %v266, %v304
  %v325 = vmul.f32 %v269, %v305
  %v326 = vmul.f32 %v271, %v306
  %v327 = vmul.f32 %v274, %v303
  %v328 = vmul.f32 %v276, %v304
  %v329 = vmul.f32 %v279, %v305
  %v330 = vmul.f32 %v281, %v306
  %v331 = vmul.f32 %v284, %v303
  %v332 = vmul.f32 %v286, %v304
  %v333 = vmul.f32 %v289, %v305
  %v334 = vmul.f32 %v291, %v306
  %v335 = vmul.f32 %v294, %v303
  %v336 = vmul.f32 %v296, %v304
  %v337 = vmul.f32 %v299, %v305
  %v338 = vmul.f32 %v301, %v306
  %v339 = vadd.f32 %v307, %v308
  %v340 = vadd.f32 %v339, %v309
  %v341 = vadd.f32 %v340, %v310
  %v342 = vrot.slane %v341, 4
  %v343 = vadd.f32 %v341, %v342
  %v344 = vrot.slane %v343, 2
  %v345 = vadd.f32 %v343, %v344
  %v346 = vrot.slane %v345, 1
  %v347 = vadd.f32 %v345, %v346
  %v348 = vadd.f32 %v311, %v312
  %v349 = vadd.f32 %v348, %v313
  %v350 = vadd.f32 %v349, %v314
  %v351 = vrot.slane %v350, 4
  %v352 = vadd.f32 %v350, %v351
  %v353 = vrot.slane %v352, 2
  %v354 = vadd.f32 %v352, %v353
  %v355 = vrot.slane %v354, 1
  %v356 = vadd.f32 %v354, %v355
  %v357 = vadd.f32 %v315, %v316
  %v358 = vadd.f32 %v357, %v317
  %v359 = vadd.f32 %v358, %v318
  %v360 = vrot.slane %v359, 4
  %v361 = vadd.f32 %v359, %v360
  %v362 = vrot.slane %v361, 2
  %v363 = vadd.f32 %v361, %v362
  %v364 = vrot.slane %v363, 1
  %v365 = vadd.f32 %v363, %v364
  %v366 = vadd.f32 %v319, %v320
  %v367 = vadd.f32 %v366, %v321
  %v368 = vadd.f32 %v367, %v322
  %v369 = vrot.slane %v368, 4
  %v370 = vadd.f32 %v368, %v369
  %v371 = vrot.slane %v370, 2
  %v372 = vadd.f32 %v370, %v371
  %v373 = vrot.slane %v372, 1
  %v374 = vadd.f32 %v372, %v373
  %v375 = vadd.f32 %v323, %v324
  %v376 = vadd.f32 %v375, %v325
  %v377 = vadd.f32 %v376, %v326
  %v378 = vrot.slane %v377, 4
  %v379 = vadd.f32 %v377, %v378
  %v380 = vrot.slane %v379, 2
  %v381 = vadd.f32 %v379, %v380
  %v382 = vrot.slane %v381, 1
  %v383 = vadd.f32 %v381, %v382
  %v384 = vadd.f32 %v327, %v328
  %v385 = vadd.f32 %v384, %v329
  %v386 = vadd.f32 %v385, %v330
  %v387 = vrot.slane %v386, 4
  %v388 = vadd.f32 %v386, %v387
  %v389 = vrot.slane %v388, 2
  %v390 = vadd.f32 %v388, %v389
  %v391 = vrot.slane %v390, 1
  %v392 = vadd.f32 %v390, %v391
  %v393 = vadd.f32 %v331, %v332
  %v394 = vadd.f32 %v393, %v333
  %v395 = vadd.f32 %v394, %v334
  %v396 = vrot.slane %v395, 4
  %v397 = vadd.f32 %v395, %v396
  %v398 = vrot.slane %v397, 2
  %v399 = vadd.f32 %v397, %v398
  %v400 = vrot.slane %v399, 1
  %v401 = vadd.f32 %v399, %v400
  %v402 = vadd.f32 %v335, %v336
  %v403 = vadd.f32 %v402, %v337
  %v404 = vadd.f32 %v403, %v338
  %v405 = vrot.slane %v404, 4
  %v406 = vadd.f32 %v404, %v405
  %v407 = vrot.slane %v406, 2
  %v408 = vadd.f32 %v406, %v407
  %v409 = vrot.slane %v408, 1
  %v410 = vadd.f32 %v408, %v409
  %v411 = vld [vmem:[%s4] sm:$0x1]
  %v412 = vperm.slane %v411, 0
  %v413 = vadd.f32 %v347, %v412
  %v414 = vadd.f32 %v356, %v412
  %v415 = vadd.f32 %v365, %v412
  %v416 = vadd.f32 %v374, %v412
  %v417 = vadd.f32 %v383, %v412
  %v418 = vadd.f32 %v392, %v412
  %v419 = vadd.f32 %v401, %v412
  %v420 = vadd.f32 %v410, %v412
  %v421 = vld [vmem:[%s3] sm:$0xff]
  %v430 = vrot.slane %v414, 7
  %vm431 = vcmask 1041409
  %v432 = vsel %vm431, %v430, %v413
  %v433 = vrot.slane %v415, 6
  %vm434 = vcmask 1042434
  %v435 = vsel %vm434, %v433, %v432
  %v436 = vrot.slane %v416, 5
  %vm437 = vcmask 1043459
  %v438 = vsel %vm437, %v436, %v435
  %v439 = vrot.slane %v417, 4
  %vm440 = vcmask 1044484
  %v441 = vsel %vm440, %v439, %v438
  %v442 = vrot.slane %v418, 3
  %vm443 = vcmask 1045509
  %v444 = vsel %vm443, %v442, %v441
  %v445 = vrot.slane %v419, 2
  %vm446 = vcmask 1046534
  %v447 = vsel %vm446, %v445, %v444
  %v448 = vrot.slane %v420, 1
  %vm449 = vcmask 1047559
  %v450 = vsel %vm449, %v448, %v447
  %vm452 = vcmask 64512
  %v454 = vsel %vm452, %v421, 0
  %456 = vmatpush.msra.mxu0 0.0
  %457 = vmatpush.msra.mxu0 0.0
  %458 = vmatpush.msra.mxu0 0.0
  %459 = vmatpush.msra.mxu0 0.0
  %460 = vmatpush.msra.mxu0 0.0
  %461 = vmatpush.msra.mxu0 0.0
  %462 = vmatpush.msra.mxu0 0.0
  %463 = vmatpush.msra.mxu0 0.0
  %464 = vmatpush.msra.mxu0 0.0
  %465 = vmatpush.msra.mxu0 0.0
  %466 = vmatpush.msra.mxu0 0.0
  %467 = vmatpush.msra.mxu0 0.0
  %468 = vmatpush.msra.mxu0 0.0
  %469 = vmatpush.msra.mxu0 0.0
  %470 = vmatpush.msra.mxu0 0.0
  %471 = vmatpush.msra.mxu0 %v450
  %472 = vmatmul.f32.gmra.mxu0 %v454
  %v473 = vpop.f32.mrf.mxu0
  %v474 = vadd.f32 0.0, %v473
  %475 = vdwg.mxu0
  %v476 = vld [vmem:[%s4 + $0x1] sm:$0x1]
  %v477 = vld [vmem:[%s4 + $0x2] sm:$0x1]
  %478 = vst [vmem:[%s5] sm:$0x1] %v476
  %479 = vst [vmem:[%s5 + $0x8] sm:$0x1] %v476
  %480 = vst [vmem:[%s6] sm:$0x1] %v477
  %481 = vst [vmem:[%s6 + $0x8] sm:$0x1] %v477
  %483 = vst [vmem:[%s5 + $0x1] sm:$0xf] %v438
  %484 = vst [vmem:[%s6 + $0x1] sm:$0xf] %v474
  %v485 = vrot.slane %v418, 7
  %v486 = vsel %vm431, %v485, %v417
  %v487 = vrot.slane %v419, 6
  %v488 = vsel %vm434, %v487, %v486
  %v489 = vrot.slane %v420, 5
  %v490 = vsel %vm437, %v489, %v488
  %s492 = scalar_lea.vmem %s5, 8
  %493 = vst [vmem:[%s492 + $0x1] sm:$0xf] %v490
  %s494 = scalar_lea.vmem %s6, 8
  %495 = vst [vmem:[%s494 - $0x3] sm:$0xf0] %v474
  // Predicated region
  $region22: #{embedding_forward.1} parent=0 // pred_check
    _
  $region23: #{embedding_forward.1} parent=0 // pred_check_branch
    %497 = sbr.rel (0) target = $region25
  $region24: #{embedding_forward.1} parent=0 // pred_region
    _
  $region25: #{embedding_forward.1} parent=0 // pred_fallthru
    _
  // Predicated region
  $region26: #{embedding_forward.1} parent=0 // pred_check
    _
  $region27: #{embedding_forward.1} parent=0 // pred_check_branch
    %499 = sbr.rel (0) target = $region29
  $region28: #{embedding_forward.1} parent=0 // pred_region
    _
  $region29: #{embedding_forward.1} parent=0 // pred_fallthru
    _
  // Predicated region
  $region30: #{embedding_forward.1} parent=0 // pred_check
    _
  $region31: #{embedding_forward.1} parent=0 // pred_check_branch
    %501 = sbr.rel (0) target = $region33
  $region32: #{embedding_forward.1} parent=0 // pred_region
    _
  $region33: #{embedding_forward.1} parent=0 // pred_fallthru
    _
  // Predicated region
  $region34: #{embedding_forward.1} parent=0 // pred_check
    _
  $region35: #{embedding_forward.1} parent=0 // pred_check_branch
    %503 = sbr.rel (0) target = $region37
  $region36: #{embedding_forward.1} parent=0 // pred_region
    _
  $region37: #{embedding_forward.1} parent=0 // pred_fallthru
    _

</llo_original>
